<compile_context>
chip_gen: v5e
topology: v5e:2x2
jax: 0.10.0
libtpu: 0.0.40
codegen_flags: <defaults>
</compile_context>

<pallas_src>
import functools

import jax
import jax.numpy as jnp
from jax.experimental import pallas as pl
from jax.experimental.pallas import tpu as pltpu

_NEG_BIG = -1e30  # "minus infinity" bias for padded logit columns (softmax-safe)


def _round_up(n, m):
    return ((n + m - 1) // m) * m


def _gating_kernel(x_ref, w0_ref, bias_ref, w1_ref, o_ref, *,
                   h_pad, e_real, enable_softmax, narrow_out):
    # Packed biases: [b0 (H_pad) | b1 (E_pad)], f32. Static 128-aligned lane slices.
    b0 = bias_ref[:, :h_pad]      # (1, H_pad)
    b1 = bias_ref[:, h_pad:]      # (1, E_pad); padded expert cols carry -1e30

    # In-kernel bf16 cast of the f32 activation tile (VPU has huge slack here);
    # keeps the HBM input stream at 4 B/elem with no wrapper-side round trip.
    x = x_ref[...].astype(jnp.bfloat16)

    # Layer 0: bf16 MXU matmul, f32 accumulation, f32 epilogue (bias + ReLU).
    h = jnp.dot(x, w0_ref[...], preferred_element_type=jnp.float32)
    h = jnp.maximum(h + b0, 0.0)

    # Layer 1: bf16 MXU matmul, f32 accumulation.
    logits = jnp.dot(h.astype(jnp.bfloat16), w1_ref[...],
                     preferred_element_type=jnp.float32)
    logits = logits + b1

    if enable_softmax:
        # Numerically stable softmax over experts; padded columns carry a -1e30
        # bias so their exp underflows to exactly 0.
        m = jnp.max(logits, axis=-1, keepdims=True)
        e = jnp.exp(logits - m)
        denom = jnp.sum(e, axis=-1, keepdims=True)
        logits = e * pl.reciprocal(denom, approx=True)

    if narrow_out:
        # Store only the E real expert columns (masked vst.msk partial stores;
        # 16x less writeback — the right trade on v5e).
        o_ref[...] = logits[:, :e_real].astype(o_ref.dtype)
    else:
        o_ref[...] = logits.astype(o_ref.dtype)


def init_params(key, input_dim, hidden_dim, num_experts):
    """PyTorch-layout f32 params: kaiming_normal (fan_in, relu) weights, zero biases."""
    k0, k1 = jax.random.split(key)
    std0 = (2.0 / input_dim) ** 0.5
    std1 = (2.0 / hidden_dim) ** 0.5
    return {
        "W0": std0 * jax.random.normal(k0, (hidden_dim, input_dim), jnp.float32),
        "b0": jnp.zeros((hidden_dim,), jnp.float32),
        "W1": std1 * jax.random.normal(k1, (num_experts, hidden_dim), jnp.float32),
        "b1": jnp.zeros((num_experts,), jnp.float32),
    }


def prepare_params(params):
    """One-time: transpose to (in, out), pad H/E to 128 lanes, cast weights bf16,
    pack biases into a single f32 operand. Hoisted out of the per-call path."""
    W0, b0, W1, b1 = params["W0"], params["b0"], params["W1"], params["b1"]
    H, D = W0.shape
    E = W1.shape[0]
    H_pad = _round_up(H, 128)
    E_pad = _round_up(E, 128)

    w0_t = jnp.zeros((D, H_pad), jnp.bfloat16).at[:, :H].set(
        W0.T.astype(jnp.bfloat16))
    w1_t = jnp.zeros((H_pad, E_pad), jnp.bfloat16).at[:H, :E].set(
        W1.T.astype(jnp.bfloat16))

    bias = jnp.zeros((1, H_pad + E_pad), jnp.float32)
    bias = bias.at[0, :H].set(b0)
    bias = bias.at[0, H_pad:].set(_NEG_BIG)          # padded expert columns
    bias = bias.at[0, H_pad:H_pad + E].set(b1)       # real expert biases

    return {"w0_t": w0_t, "w1_t": w1_t, "bias": bias,
            "dims": (D, H, E, H_pad, E_pad)}


def gating_network_forward(x, prepared, *, enable_softmax=False, block_m=1024,
                           narrow_output=False, out_dtype=jnp.float32):
    """x: (B, D) float. Returns (B, E) `out_dtype` logits (or softmax probs)."""
    D, H, E, H_pad, E_pad = prepared["dims"]
    B = x.shape[0]
    assert x.shape[1] == D

    x = x.astype(jnp.float32)

    # Batch tiling: bound padding to <8 rows per tile (not round_up(B, tm)),
    # and force >=2 grid steps once there's enough work so that v7x's two
    # TensorCores both run ("parallel" only helps with grid >= 2).
    grid_m = pl.cdiv(B, block_m)
    if grid_m < 2 and B >= 128:
        grid_m = 2
    tm = _round_up(pl.cdiv(B, grid_m), 8)
    B_pad = tm * grid_m

    if B_pad != B:
        x = jnp.pad(x, ((0, B_pad - B), (0, 0)))   # few zero rows, sliced off below

    E_out = E if narrow_output else E_pad

    kernel = functools.partial(_gating_kernel, h_pad=H_pad, e_real=E,
                               enable_softmax=enable_softmax,
                               narrow_out=narrow_output)

    flops = 2 * B_pad * (D * H_pad + H_pad * E_pad)
    transcendentals = B_pad * E_pad if enable_softmax else 0
    bytes_accessed = (x.size * 4                       # f32 activations
                      + prepared["w0_t"].size * 2
                      + prepared["w1_t"].size * 2
                      + prepared["bias"].size * 4
                      + B_pad * E_out * 2)             # bf16 output

    out = pl.pallas_call(
        kernel,
        out_shape=jax.ShapeDtypeStruct((B_pad, E_out), jnp.bfloat16),
        grid_spec=pltpu.PrefetchScalarGridSpec(
            num_scalar_prefetch=0,
            grid=(grid_m,),
            in_specs=[
                pl.BlockSpec((tm, D), lambda i: (i, 0)),             # x tile (f32)
                pl.BlockSpec((D, H_pad), lambda i: (0, 0)),          # W0^T (resident bf16)
                pl.BlockSpec((1, H_pad + E_pad), lambda i: (0, 0)),  # packed biases (f32)
                pl.BlockSpec((H_pad, E_pad), lambda i: (0, 0)),      # W1^T (resident bf16)
            ],
            out_specs=pl.BlockSpec((tm, E_out), lambda i: (i, 0)),
        ),
        compiler_params=pltpu.CompilerParams(
            dimension_semantics=("parallel",)),
        cost_estimate=pl.CostEstimate(flops=flops,
                                      transcendentals=transcendentals,
                                      bytes_accessed=bytes_accessed),
    )(x, prepared["w0_t"], prepared["bias"], prepared["w1_t"])

    out = out[:B] if narrow_output else out[:B, :E]
    return out.astype(out_dtype)


def _reference_forward(x, params, enable_softmax=False):
    h = jnp.maximum(x @ params["W0"].T + params["b0"], 0.0)
    logits = h @ params["W1"].T + params["b1"]
    if enable_softmax:
        return jax.nn.softmax(logits, axis=1)
    return logits


if __name__ == "__main__":
    # GatingNetwork(input_dim=32, gating_hidden_dim=[32], num_experts=8)
    D, H, E = 32, 32, 8

    key = jax.random.PRNGKey(0)
    kx, kx2, kp = jax.random.split(key, 3)
    params = init_params(kp, D, H, E)
    prepared = prepare_params(params)   # one-time pad/transpose/cast (hoisted)

    # --- small batch (B=8): raw logits, softmax path, and narrow-output path ---
    x = jax.random.normal(kx, (8, D), jnp.float32)
    out = jax.block_until_ready(gating_network_forward(x, prepared))
    out_sm = jax.block_until_ready(
        gating_network_forward(x, prepared, enable_softmax=True))
    out_nw = jax.block_until_ready(
        gating_network_forward(x, prepared, enable_softmax=True, narrow_output=True))

    ref = _reference_forward(x, params)
    ref_sm = _reference_forward(x, params, enable_softmax=True)
    # bf16 MXU operands + bf16 output + approx reciprocal → loosened tolerance.
    assert out.shape == (8, E)
    assert jnp.allclose(out, ref, atol=5e-2, rtol=5e-2)
    assert jnp.allclose(out_sm, ref_sm, atol=5e-2, rtol=5e-2)
    assert out_nw.shape == (8, E)
    assert jnp.allclose(out_nw, ref_sm, atol=5e-2, rtol=5e-2)

    # --- larger batch (B=300): exercises the fixed tiling (grid_m=2, tm=152,
    #     B_pad=304) and ragged zero-row padding ---
    x2 = jax.random.normal(kx2, (300, D), jnp.float32)
    out2 = jax.block_until_ready(gating_network_forward(x2, prepared))
    ref2 = _reference_forward(x2, params)
    assert out2.shape == (300, E)
    assert jnp.allclose(out2, ref2, atol=5e-2, rtol=5e-2)

    print("KERNEL_OK")
</pallas_src>

<mosaic_0001>
module attributes {stable_mosaic.version = 11 : i64} {
  func.func @_gating_kernel(%arg0: i32, %arg1: memref<8x32xf32, #tpu.memory_space<vmem>>, %arg2: memref<32x128xbf16, #tpu.memory_space<vmem>>, %arg3: memref<1x256xf32, #tpu.memory_space<vmem>>, %arg4: memref<128x128xbf16, #tpu.memory_space<vmem>>, %arg5: memref<8x128xbf16, #tpu.memory_space<vmem>>) attributes {dimension_semantics = [#tpu.dimension_semantics<parallel>], iteration_bounds = array<i64: 1>, scalar_prefetch = 0 : i64, scratch_operands = 0 : i64, tpu.core_type = #tpu.core_type<tc>, window_params = [{transform_indices = @transform_0, window_bounds = array<i64: 8, 32>}, {pipeline_mode = #tpu.pipeline_mode<synchronous>, transform_indices = @transform_1, window_bounds = array<i64: 32, 128>}, {pipeline_mode = #tpu.pipeline_mode<synchronous>, transform_indices = @transform_2, window_bounds = array<i64: 1, 256>}, {pipeline_mode = #tpu.pipeline_mode<synchronous>, transform_indices = @transform_3, window_bounds = array<i64: 128, 128>}, {transform_indices = @transform_4, window_bounds = array<i64: 8, 128>}]} {
    %c0 = arith.constant 0 : index
    %c0_0 = arith.constant 0 : index
    %0 = vector.load %arg3[%c0, %c0_0] : memref<1x256xf32, #tpu.memory_space<vmem>>, vector<1x128xf32>
    %c0_1 = arith.constant 0 : index
    %c128 = arith.constant 128 : index
    %1 = vector.load %arg3[%c0_1, %c128] : memref<1x256xf32, #tpu.memory_space<vmem>>, vector<1x128xf32>
    %c0_2 = arith.constant 0 : index
    %c0_3 = arith.constant 0 : index
    %2 = vector.load %arg1[%c0_2, %c0_3] : memref<8x32xf32, #tpu.memory_space<vmem>>, vector<8x32xf32>
    %3 = arith.truncf %2 : vector<8x32xf32> to vector<8x32xbf16>
    %c0_4 = arith.constant 0 : index
    %c0_5 = arith.constant 0 : index
    %4 = vector.load %arg2[%c0_4, %c0_5] : memref<32x128xbf16, #tpu.memory_space<vmem>>, vector<32x128xbf16>
    %cst = arith.constant dense<0.000000e+00> : vector<8x128xf32>
    %5 = tpu.matmul %3, %4, %cst {dimension_numbers = #tpu.dot_dimension_numbers<[1], [0], [0], [1], [0, 0, 1, 1], [], []>} : vector<8x32xbf16>, vector<32x128xbf16>, vector<8x128xf32> -> vector<8x128xf32>
    %6 = vector.broadcast %0 : vector<1x128xf32> to vector<8x128xf32>
    %7 = arith.addf %5, %6 : vector<8x128xf32>
    %cst_6 = arith.constant 0.000000e+00 : f32
    %8 = vector.broadcast %cst_6 : f32 to vector<8x128xf32>
    %9 = arith.maximumf %7, %8 : vector<8x128xf32>
    %10 = arith.truncf %9 : vector<8x128xf32> to vector<8x128xbf16>
    %c0_7 = arith.constant 0 : index
    %c0_8 = arith.constant 0 : index
    %11 = vector.load %arg4[%c0_7, %c0_8] : memref<128x128xbf16, #tpu.memory_space<vmem>>, vector<128x128xbf16>
    %cst_9 = arith.constant dense<0.000000e+00> : vector<8x128xf32>
    %12 = tpu.matmul %10, %11, %cst_9 {dimension_numbers = #tpu.dot_dimension_numbers<[1], [0], [0], [1], [0, 0, 1, 1], [], []>} : vector<8x128xbf16>, vector<128x128xbf16>, vector<8x128xf32> -> vector<8x128xf32>
    %13 = vector.broadcast %1 : vector<1x128xf32> to vector<8x128xf32>
    %14 = arith.addf %12, %13 : vector<8x128xf32>
    %15 = arith.truncf %14 : vector<8x128xf32> to vector<8x128xbf16>
    %c0_10 = arith.constant 0 : index
    %c0_11 = arith.constant 0 : index
    %16 = vector.load %arg5[%c0_10, %c0_11] : memref<8x128xbf16, #tpu.memory_space<vmem>>, vector<8x128xbf16>
    tpu.vector_store %arg5[%c0_10, %c0_11], %15 {strides = array<i32>} : memref<8x128xbf16, #tpu.memory_space<vmem>>, vector<8x128xbf16>,
    return
  }
  func.func @transform_0(%arg0: i32) -> (i32, i32) {
    %c0_i32 = arith.constant 0 : i32
    %c0_i32_0 = arith.constant 0 : i32
    return %arg0, %c0_i32 : i32, i32
  }
  func.func @transform_1(%arg0: i32) -> (i32, i32) {
    %c0_i32 = arith.constant 0 : i32
    %c0_i32_0 = arith.constant 0 : i32
    %c0_i32_1 = arith.constant 0 : i32
    return %c0_i32, %c0_i32_0 : i32, i32
  }
  func.func @transform_2(%arg0: i32) -> (i32, i32) {
    %c0_i32 = arith.constant 0 : i32
    %c0_i32_0 = arith.constant 0 : i32
    %c0_i32_1 = arith.constant 0 : i32
    return %c0_i32, %c0_i32_0 : i32, i32
  }
  func.func @transform_3(%arg0: i32) -> (i32, i32) {
    %c0_i32 = arith.constant 0 : i32
    %c0_i32_0 = arith.constant 0 : i32
    %c0_i32_1 = arith.constant 0 : i32
    return %c0_i32, %c0_i32_0 : i32, i32
  }
  func.func @transform_4(%arg0: i32) -> (i32, i32) {
    %c0_i32 = arith.constant 0 : i32
    %c0_i32_0 = arith.constant 0 : i32
    return %arg0, %c0_i32 : i32, i32
  }
}

</mosaic_0001>

<llo_original>
// kernel: tpu_custom_call.1
$region0: #{tpu_custom_call.1}
  #allocation0 [shape = 'u32[]', space=smem, size = 0x4, offset = 0x4, fixed_abs, tag = 'smem constant byte address 0x4 - core index']
  #allocation1 [shape = 'u32[72,128]{1,0:T(1,128)}', space=vmem, size = 0x9000, scoped, tag = 'internal scratch']
  %s0 = inlined_call_operand.hbm [shape: f32[8,32], index: 0, kind: input, shape index: {}]
  %s1 = inlined_call_operand.hbm [shape: bf16[32,128], index: 1, kind: input, shape index: {}]
  %s2 = inlined_call_operand.hbm [shape: f32[1,256], index: 2, kind: input, shape index: {}]
  %s3 = inlined_call_operand.hbm [shape: bf16[128,128], index: 3, kind: input, shape index: {}]
  %s4 = inlined_call_operand.hbm [shape: bf16[8,128], index: 4, kind: output, shape index: {}]
  %s5 = sld [smem:[#allocation0]]
  $region42: #{tpu_custom_call.1} parent=0
    _
  %s7 = ssub.s32 1, %s5
  %s8 = scalar_select 0, %s7, %s5
  $region1: #{tpu_custom_call.1} parent=0
    #allocation2 [shape = 'u8[4096]{0}', space=vmem, size = 0x1000, scoped, tag = 'input window, operand 0, single buffered']
    #allocation3 [shape = 's32[1]{0}', space=sflag, size = 0x4, scoped, tag = 'scoped memory for tpu_custom_call.1']
    #allocation4 [shape = 's32[1]{0}', space=sflag, size = 0x4, scoped, tag = 'scoped memory for tpu_custom_call.1']
    #allocation5 [shape = 'u8[8192]{0}', space=vmem, size = 0x2000, scoped, tag = 'input window, operand 1, single buffered']
    #allocation6 [shape = 's32[1]{0}', space=sflag, size = 0x4, scoped, tag = 'scoped memory for tpu_custom_call.1']
    #allocation7 [shape = 'u8[1024]{0}', space=vmem, size = 0x400, scoped, tag = 'input window, operand 2, single buffered']
    #allocation8 [shape = 'u8[32768]{0}', space=vmem, size = 0x8000, scoped, tag = 'input window, operand 3, single buffered']
    #allocation9 [shape = 's32[1]{0}', space=sflag, size = 0x4, scoped, tag = 'scoped memory for tpu_custom_call.1']
    #allocation10 [shape = 'u8[2048]{0}', space=vmem, size = 0x800, scoped, tag = 'output window, operand 0, single buffered']
    %9 = vsyncpa [#allocation3], 0
    %10 = vsyncpa [#allocation6], 0
    %11 = vsyncpa [#allocation9], 0
    %12 = vsyncpa [#allocation4], 0
    // Predicated region
    $region2: #{tpu_custom_call.1} parent=1 // pred_check
      _
    $region3: #{tpu_custom_call.1} parent=1 // pred_check_branch
      %14 = sbr.rel (0) target = $region5
    $region4: #{tpu_custom_call.1} parent=1 // pred_region
      %16 = vsyncadd [#allocation3], 0
      %s18 = sshll.u32 %s0, 4
      %s19 = int_to_ptr.hbm [resolvable:$true] %s18
      %s20 = sshll.u32 [#allocation2], 4
      %s21 = int_to_ptr.vmem [resolvable:$true] %s20
      %23 = dma.hbm_to_vmem [thread:$0]  %s19, 128, %s21, [#allocation3]
    $region5: #{tpu_custom_call.1} parent=1 // pred_fallthru
      _
    // Predicated region
    $region6: #{tpu_custom_call.1} parent=1 // pred_check
      _
    $region7: #{tpu_custom_call.1} parent=1 // pred_check_branch
      %25 = sbr.rel (0) target = $region9
    $region8: #{tpu_custom_call.1} parent=1 // pred_region
      %27 = vsyncadd [#allocation6], 0
      %s28 = sshll.u32 %s1, 4
      %s29 = int_to_ptr.hbm [resolvable:$true] %s28
      %s30 = sshll.u32 [#allocation5], 4
      %s31 = int_to_ptr.vmem [resolvable:$true] %s30
      %36 = dma.hbm_to_vmem [thread:$0]  %s29, 256, %s31, [#allocation6], 64, 64, 4
    $region9: #{tpu_custom_call.1} parent=1 // pred_fallthru
      _
    // Predicated region
    $region10: #{tpu_custom_call.1} parent=1 // pred_check
      _
    $region11: #{tpu_custom_call.1} parent=1 // pred_check_branch
      %38 = sbr.rel (0) target = $region13
    $region12: #{tpu_custom_call.1} parent=1 // pred_region
      %40 = vsyncadd [#allocation6], 0
      %s42 = sshll.u32 %s2, 4
      %s43 = int_to_ptr.hbm [resolvable:$true] %s42
      %s44 = sshll.u32 [#allocation7], 4
      %s45 = int_to_ptr.vmem [resolvable:$true] %s44
      %47 = dma.hbm_to_vmem [thread:$0]  %s43, 32, %s45, [#allocation6]
    $region13: #{tpu_custom_call.1} parent=1 // pred_fallthru
      _
    // Predicated region
    $region14: #{tpu_custom_call.1} parent=1 // pred_check
      _
    $region15: #{tpu_custom_call.1} parent=1 // pred_check_branch
      %49 = sbr.rel (0) target = $region17
    $region16: #{tpu_custom_call.1} parent=1 // pred_region
      %51 = vsyncadd [#allocation9], 0
      %s52 = sshll.u32 %s3, 4
      %s53 = int_to_ptr.hbm [resolvable:$true] %s52
      %s54 = sshll.u32 [#allocation8], 4
      %s55 = int_to_ptr.vmem [resolvable:$true] %s54
      %60 = dma.hbm_to_vmem [thread:$0]  %s53, 1024, %s55, [#allocation9], 64, 64, 4
    $region17: #{tpu_custom_call.1} parent=1 // pred_fallthru
      _
    // Predicated region
    $region18: #{tpu_custom_call.1} parent=1 // pred_check
      _
    $region19: #{tpu_custom_call.1} parent=1 // pred_check_branch
      %62 = sbr.rel (0) target = $region21
    $region20: #{tpu_custom_call.1} parent=1 // pred_region
      %64 = dma.done [#allocation3], 128
    $region21: #{tpu_custom_call.1} parent=1 // pred_fallthru
      _
    // Predicated region
    $region22: #{tpu_custom_call.1} parent=1 // pred_check
      _
    $region23: #{tpu_custom_call.1} parent=1 // pred_check_branch
      %66 = sbr.rel (0) target = $region25
    $region24: #{tpu_custom_call.1} parent=1 // pred_region
      %68 = dma.done [#allocation6], 256
    $region25: #{tpu_custom_call.1} parent=1 // pred_fallthru
      _
    // Predicated region
    $region26: #{tpu_custom_call.1} parent=1 // pred_check
      _
    $region27: #{tpu_custom_call.1} parent=1 // pred_check_branch
      %70 = sbr.rel (0) target = $region29
    $region28: #{tpu_custom_call.1} parent=1 // pred_region
      %72 = dma.done [#allocation6], 32
    $region29: #{tpu_custom_call.1} parent=1 // pred_fallthru
      _
    // Predicated region
    $region30: #{tpu_custom_call.1} parent=1 // pred_check
      _
    $region31: #{tpu_custom_call.1} parent=1 // pred_check_branch
      %74 = sbr.rel (0) target = $region33
    $region32: #{tpu_custom_call.1} parent=1 // pred_region
      %76 = dma.done [#allocation9], 1024
    $region33: #{tpu_custom_call.1} parent=1 // pred_fallthru
      _
    %v78 = vld [vmem:[#allocation7] sm:$0x1]
    %v79 = vld [vmem:[#allocation7 + $0x1] sm:$0x1]
    %v80 = vld [vmem:[#allocation2] sm:$0xff]
    %v81 = vpack.c.bf16 %v80, %v80
    %v82 = vld [vmem:[#allocation5] sm:$0xf]
    %v83 = vld [vmem:[#allocation5 + $0x4] sm:$0xf]
    %v84 = vld [vmem:[#allocation5 + $0x8] sm:$0xf]
    %v85 = vld [vmem:[#allocation5 + $0xc] sm:$0xf]
    %v87 = vperm.slane %v78, 0
    %v93 = vunpack.c.l.b16 %v82
    %v94 = vunpack.c.l.b16 %v83
    %v95 = vunpack.c.l.b16 %v84
    %v96 = vunpack.c.l.b16 %v85
    %v97 = vpack.c.b16 %v94, %v93
    %v98 = vpack.c.b16 %v96, %v95
    %vm101 = vcmask 261120
    %v103 = vsel %vm101, %v81, 0
    %105 = vmatpush.bf16.msra.mxu0 0
    %106 = vmatpush.bf16.msra.mxu0 0
    %107 = vmatpush.bf16.msra.mxu0 0
    %108 = vmatpush.bf16.msra.mxu0 0
    %109 = vmatpush.bf16.msra.mxu0 0
    %110 = vmatpush.bf16.msra.mxu0 0
    %111 = vmatpush.bf16.msra.mxu0 %v98
    %112 = vmatpush.bf16.msra.mxu0 %v97
    %113 = vmatmul.bf16.gmra.mxu0 %v103
    %v114 = vpop.f32.mrf.mxu0
    %v115 = vadd.f32 %v87, %v114
    %v116 = vpop.f32.mrf.mxu0
    %117 = vdwg.mxu0
    %v118 = vmax.f32 %v115, 0.0
    %v119 = vpack.c.bf16 %v118, %v118
    %v120 = vld [vmem:[#allocation8] sm:$0xf]
    %v121 = vld [vmem:[#allocation8 + $0x4] sm:$0xf]
    %v122 = vld [vmem:[#allocation8 + $0x8] sm:$0xf]
    %v123 = vld [vmem:[#allocation8 + $0xc] sm:$0xf]
    %v124 = vld [vmem:[#allocation8 + $0x10] sm:$0xf]
    %v125 = vld [vmem:[#allocation8 + $0x14] sm:$0xf]
    %v126 = vld [vmem:[#allocation8 + $0x18] sm:$0xf]
    %v127 = vld [vmem:[#allocation8 + $0x1c] sm:$0xf]
    %v128 = vld [vmem:[#allocation8 + $0x20] sm:$0xf]
    %v129 = vld [vmem:[#allocation8 + $0x24] sm:$0xf]
    %v130 = vld [vmem:[#allocation8 + $0x28] sm:$0xf]
    %v131 = vld [vmem:[#allocation8 + $0x2c] sm:$0xf]
    %v132 = vld [vmem:[#allocation8 + $0x30] sm:$0xf]
    %v133 = vld [vmem:[#allocation8 + $0x34] sm:$0xf]
    %v134 = vld [vmem:[#allocation8 + $0x38] sm:$0xf]
    %v135 = vld [vmem:[#allocation8 + $0x3c] sm:$0xf]
    %v137 = vperm.slane %v79, 0
    %v155 = vunpack.c.l.b16 %v120
    %v156 = vunpack.c.l.b16 %v121
    %v157 = vunpack.c.l.b16 %v122
    %v158 = vunpack.c.l.b16 %v123
    %v159 = vunpack.c.l.b16 %v124
    %v160 = vunpack.c.l.b16 %v125
    %v161 = vunpack.c.l.b16 %v126
    %v162 = vunpack.c.l.b16 %v127
    %v163 = vunpack.c.l.b16 %v128
    %v164 = vunpack.c.l.b16 %v129
    %v165 = vunpack.c.l.b16 %v130
    %v166 = vunpack.c.l.b16 %v131
    %v167 = vunpack.c.l.b16 %v132
    %v168 = vunpack.c.l.b16 %v133
    %v169 = vunpack.c.l.b16 %v134
    %v170 = vunpack.c.l.b16 %v135
    %v171 = vpack.c.b16 %v156, %v155
    %v172 = vpack.c.b16 %v158, %v157
    %v173 = vpack.c.b16 %v160, %v159
    %v174 = vpack.c.b16 %v162, %v161
    %v175 = vpack.c.b16 %v164, %v163
    %v176 = vpack.c.b16 %v166, %v165
    %v177 = vpack.c.b16 %v168, %v167
    %v178 = vpack.c.b16 %v170, %v169
    %187 = vmatpush.bf16.msra.mxu0 %v178
    %188 = vmatpush.bf16.msra.mxu0 %v177
    %189 = vmatpush.bf16.msra.mxu0 %v176
    %190 = vmatpush.bf16.msra.mxu0 %v175
    %191 = vmatpush.bf16.msra.mxu0 %v174
    %192 = vmatpush.bf16.msra.mxu0 %v173
    %193 = vmatpush.bf16.msra.mxu0 %v172
    %194 = vmatpush.bf16.msra.mxu0 %v171
    %195 = vmatmul.bf16.gmra.mxu0 %v119
    %v196 = vpop.f32.mrf.mxu0
    %v197 = vadd.f32 %v137, %v196
    %v198 = vpop.f32.mrf.mxu0
    %199 = vdwg.mxu0
    %v200 = vpack.c.bf16 %v197, %v197
    %201 = vst [vmem:[#allocation10] sm:$0xf] %v200
    // Predicated region
    $region34: #{tpu_custom_call.1} parent=1 // pred_check
      _
    $region35: #{tpu_custom_call.1} parent=1 // pred_check_branch
      %203 = sbr.rel (0) target = $region37
    $region36: #{tpu_custom_call.1} parent=1 // pred_region
      %205 = vsyncadd [#allocation4], 0
      %s207 = sshll.u32 [#allocation10], 4
      %s208 = int_to_ptr.vmem [resolvable:$true] %s207
      %s209 = sshll.u32 %s4, 4
      %s210 = int_to_ptr.hbm [resolvable:$true] %s209
      %212 = dma.vmem_to_hbm [thread:$0]  %s208, 64, %s210, [#allocation4]
    $region37: #{tpu_custom_call.1} parent=1 // pred_fallthru
      _
    // Predicated region
    $region38: #{tpu_custom_call.1} parent=1 // pred_check
      _
    $region39: #{tpu_custom_call.1} parent=1 // pred_check_branch
      %214 = sbr.rel (0) target = $region41
    $region40: #{tpu_custom_call.1} parent=1 // pred_region
      %216 = dma.done [#allocation4], 64
    $region41: #{tpu_custom_call.1} parent=1 // pred_fallthru
      _
    %217 = vsyncpa [#allocation3], 1
    %218 = vsyncpa [#allocation6], 1
    %219 = vsyncpa [#allocation9], 1
    %220 = vsyncpa [#allocation4], 1

</llo_original>
